<compile_context>
chip_gen: v5e
topology: v5e:2x2
jax: 0.10.0
libtpu: 0.0.40
codegen_flags: <defaults>
</compile_context>

<pallas_src>
import functools
import math

import jax
import jax.numpy as jnp
from jax.experimental import pallas as pl
from jax.experimental.pallas import tpu as pltpu

_BF16 = jnp.bfloat16


# --------------------------- small math helpers ------------------------------

def _erf(x):
    # Abramowitz & Stegun 7.1.26 (|err| < 1.5e-7): exact-GELU erf without
    # relying on a lax.erf lowering inside Mosaic.
    p = 0.3275911
    a1, a2, a3, a4, a5 = (0.254829592, -0.284496736, 1.421413741,
                          -1.453152027, 1.061405429)
    s = jnp.where(x >= 0.0, 1.0, -1.0)
    ax = jnp.abs(x)
    t = 1.0 / (1.0 + p * ax)
    poly = ((((a5 * t + a4) * t + a3) * t + a2) * t + a1) * t
    return s * (1.0 - poly * jnp.exp(-ax * ax))


def _gelu(x):
    # exact (erf) GELU, matching the HF reference activation.
    # TODO(synk): tanh-GELU would relieve VALU pressure on v5e (numerics change).
    return 0.5 * x * (1.0 + _erf(x * 0.7071067811865476))


def _layer_norm(h, g, b, eps):
    mu = jnp.mean(h, axis=-1, keepdims=True)
    var = jnp.mean(jnp.square(h - mu), axis=-1, keepdims=True)
    return (h - mu) * jax.lax.rsqrt(var + eps) * g + b


def _row_block(m, target=512):
    """Largest multiple-of-8 row block <= target dividing m.

    Prefers >=2 grid steps (v7x megacore balance); only returns a block that is
    not a multiple of 8 when it equals the full extent (legal BlockSpec).
    """
    if m <= 8:
        return m
    if m <= target:
        half = m // 2
        if m % 2 == 0 and half % 8 == 0:
            return half
        return m
    for cand in range(target, 7, -8):
        if m % cand == 0:
            return cand
    return m


def _col_block(n, target=512):
    if n <= target:
        return n
    for cand in range(target, 127, -128):
        if n % cand == 0:
            return cand
    return n


# ------------------- relative-position skew (roll) probe ----------------------
#
# The disentangled gather is c2p_g[q,k] = c2p_band[q, q-k+S-1].  With the band
# reversed this is a lane roll whose shift grows by one per sublane.  The probe
# verifies (once per S) that pltpu.roll with stride lowers at this exact shape
# and that its shift/stride convention matches jnp.roll, and that the small
# (S,S) transpose needed for the p2c term lowers too.  Otherwise the decoder
# kernel uses the compact iota-selector fallback (correct, O(S^3) VPU work).

_SKEW_ROLL_CACHE = {}


def _skew_roll_supported(S):
    if S in _SKEW_ROLL_CACHE:
        return _SKEW_ROLL_CACHE[S]
    L = 2 * S

    def kern(x_ref, o_ref, t_ref):
        r = pltpu.roll(x_ref[...], S, 1, stride=1, stride_axis=0)
        o_ref[...] = r
        t_ref[...] = r[:, :S].T

    ok = False
    try:
        x = jnp.arange(S * L, dtype=jnp.float32).reshape(S, L)
        o1, o2 = pl.pallas_call(
            kern,
            out_shape=(jax.ShapeDtypeStruct((S, L), jnp.float32),
                       jax.ShapeDtypeStruct((S, S), jnp.float32)),
        )(x)
        want = jnp.stack([jnp.roll(x[q], S + q) for q in range(S)])
        ok = bool(jnp.array_equal(o1, want)
                  and jnp.array_equal(o2, want[:, :S].T))
    except Exception:
        ok = False
    _SKEW_ROLL_CACHE[S] = ok
    return ok


# ------------------- fused dual projection (row-tiled) ------------------------

def _dual_dense_kernel(x_ref, w1_ref, b1_ref, w2_ref, b2_ref, o1_ref, o2_ref):
    # One HBM read of x feeds two projections (K/V, or pos-K/pos-Q band).
    x = x_ref[...].astype(w1_ref.dtype)
    o1_ref[...] = (jnp.dot(x, w1_ref[...], preferred_element_type=jnp.float32)
                   + b1_ref[...]).astype(o1_ref.dtype)
    o2_ref[...] = (jnp.dot(x, w2_ref[...], preferred_element_type=jnp.float32)
                   + b2_ref[...]).astype(o2_ref.dtype)


def dual_dense(x, w1, b1, w2, b2, out_dtype=_BF16):
    """x:(M,K) f32; w1:(K,N1), w2:(K,N2) bf16 -> two (M,N*) arrays, row-tiled."""
    M, K = x.shape
    N1, N2 = w1.shape[1], w2.shape[1]
    bm = _row_block(M)
    return pl.pallas_call(
        _dual_dense_kernel,
        grid=(M // bm,),
        in_specs=[
            pl.BlockSpec((bm, K), lambda i: (i, 0)),
            pl.BlockSpec((K, N1), lambda i: (0, 0)),   # weights resident
            pl.BlockSpec((1, N1), lambda i: (0, 0)),
            pl.BlockSpec((K, N2), lambda i: (0, 0)),
            pl.BlockSpec((1, N2), lambda i: (0, 0)),
        ],
        out_specs=(pl.BlockSpec((bm, N1), lambda i: (i, 0)),
                   pl.BlockSpec((bm, N2), lambda i: (i, 0))),
        out_shape=(jax.ShapeDtypeStruct((M, N1), out_dtype),
                   jax.ShapeDtypeStruct((M, N2), out_dtype)),
        compiler_params=pltpu.CompilerParams(dimension_semantics=("parallel",)),
    )(x, w1, b1.reshape(1, N1), w2, b2.reshape(1, N2))


# ------------------- fused decoder layer (attention + FFN) --------------------
#
# TODO(synk): block multiple batch elements per grid step (Bb*S >= 256) for
# small-S workloads; kept 1/batch here so the toy B=2 grid still has two
# parallel steps for megacore sharding.

def _decoder_layer_kernel(qs_ref, k_ref, v_ref, mq_ref, mk_ref,
                          wqh_ref, bqh_ref, pkr_ref, pq_ref,
                          wo_ref, bo_ref, g1_ref, b1_ref,
                          wi_ref, bi_ref, wo2_ref, bo2_ref, g2_ref, b2_ref,
                          o_ref, *, num_heads, inv_scale, eps, use_roll):
    S = qs_ref.shape[1]
    L = pkr_ref.shape[1]                       # 2*S (last band row is padding)

    qs = qs_ref[0]                             # (S, H) f32 (input & residual)
    kh = k_ref[0]                              # (nH, S, d) bf16
    vh = v_ref[0]                              # (nH, S, d) bf16
    pkr = pkr_ref[...]                         # (nH, L, d) bf16 (reversed band)
    pqb = pq_ref[...]                          # (nH, L, d) bf16
    rmask = mq_ref[0] * mk_ref[0]              # (S, S) mask outer product

    # Fused per-head query projection: full-depth K=H matmuls, heads indexed
    # on the leading dim (no lane slicing); bf16 operands, f32 accumulation.
    qs_bf = qs.astype(jnp.bfloat16)
    q_heads = jnp.stack([
        jnp.dot(qs_bf, wqh_ref[h], preferred_element_type=jnp.float32)
        + bqh_ref[h]
        for h in range(num_heads)])            # (nH, S, d) f32
    qh = q_heads.astype(jnp.bfloat16)

    # Batched (over heads) content scores and positional products.
    scores = jnp.einsum('hqd,hkd->hqk', qh, kh,
                        preferred_element_type=jnp.float32)       # (nH,S,S)
    c2p = jnp.einsum('hqd,hld->hql', qh, pkr,
                     preferred_element_type=jnp.float32)          # (nH,S,L)
    p2c = jnp.einsum('hkd,hld->hkl', kh, pqb,
                     preferred_element_type=jnp.float32)          # (nH,S,L)

    if use_roll:
        # Skew gather via strided lane roll (shift grows by 1 per sublane):
        #   c2p_g[h,q,k] = c2p_band[h,q,q-k+S-1]   (reversed band -> roll S)
        #   p2c_g[h,q,k] = p2c_band[h,k,q-k+S-1]   (plain band   -> roll S+1, T)
        c2p_g = jnp.stack([
            pltpu.roll(c2p[h], S, 1, stride=1, stride_axis=0)[:, :S]
            for h in range(num_heads)])                           # [h,q,k]
        p2c_g = jnp.stack([
            pltpu.roll(p2c[h], S + 1, 1, stride=1, stride_axis=0)[:, :S].T
            for h in range(num_heads)])                           # [h,q,k]
    else:
        # Fallback: compact iota band selector (O(S^3) VPU work; toy sizes).
        iq = jax.lax.broadcasted_iota(jnp.int32, (S, S), 0)
        ik = jax.lax.broadcasted_iota(jnp.int32, (S, S), 1)
        il = jax.lax.broadcasted_iota(jnp.int32, (S, S, L), 2)
        sel_c = (il == (ik - iq + S)[:, :, None]).astype(jnp.float32)
        sel_p = (il == (iq - ik + (S - 1))[:, :, None]).astype(jnp.float32)
        c2p_g = jnp.stack([
            jnp.sum(c2p[h][:, None, :] * sel_c, axis=-1)
            for h in range(num_heads)])
        p2c_g = jnp.stack([
            jnp.sum(p2c[h][None, :, :] * sel_p, axis=-1)
            for h in range(num_heads)])

    scores = (scores + c2p_g + p2c_g) * inv_scale

    # XSoftmax: mask -> softmax -> zero-fill masked entries (matches HF,
    # including fully-masked query rows).
    neg = jnp.finfo(jnp.float32).min
    scores = jnp.where(rmask[None] > 0.0, scores, neg)
    smax = jnp.max(scores, axis=-1, keepdims=True)
    e = jnp.exp(scores - smax)
    probs = e * pl.reciprocal(jnp.sum(e, axis=-1, keepdims=True), approx=True)
    probs = probs * rmask[None]

    ctx = jnp.einsum('hqk,hkd->hqd', probs.astype(jnp.bfloat16), vh,
                     preferred_element_type=jnp.float32)          # (nH,S,d)
    ctx_cat = jnp.concatenate([ctx[h] for h in range(num_heads)], axis=-1)

    # Single full-depth output projection + residual LayerNorm.
    attn = (jnp.dot(ctx_cat.astype(jnp.bfloat16), wo_ref[...],
                    preferred_element_type=jnp.float32) + bo_ref[...])
    attn = _layer_norm(attn + qs, g1_ref[...], b1_ref[...], eps)

    # Fused FFN: intermediate -> gelu -> output + residual LayerNorm.
    h1 = (jnp.dot(attn.astype(jnp.bfloat16), wi_ref[...],
                  preferred_element_type=jnp.float32) + bi_ref[...])
    h1 = _gelu(h1)
    h2 = (jnp.dot(h1.astype(jnp.bfloat16), wo2_ref[...],
                  preferred_element_type=jnp.float32) + bo2_ref[...])
    o_ref[0] = _layer_norm(h2 + attn, g2_ref[...], b2_ref[...], eps)


def decoder_layer(qs, k_all, v_all, mq, mk, pos_k_rev, pos_q_h, blk,
                  scale, eps, use_roll):
    B, S, H = qs.shape
    nH, L, d = pos_k_rev.shape
    I = blk["wi"].shape[1]
    kern = functools.partial(_decoder_layer_kernel, num_heads=nH,
                             inv_scale=1.0 / scale, eps=eps, use_roll=use_roll)

    def c2(shape):
        return pl.BlockSpec(shape, lambda b: (0, 0))

    def c3(shape):
        return pl.BlockSpec(shape, lambda b: (0, 0, 0))

    return pl.pallas_call(
        kern,
        grid=(B,),
        in_specs=[
            pl.BlockSpec((1, S, H), lambda b: (b, 0, 0)),          # query_states
            pl.BlockSpec((1, nH, S, d), lambda b: (b, 0, 0, 0)),   # K (bf16)
            pl.BlockSpec((1, nH, S, d), lambda b: (b, 0, 0, 0)),   # V (bf16)
            pl.BlockSpec((1, S, 1), lambda b: (b, 0, 0)),          # mask (q)
            pl.BlockSpec((1, 1, S), lambda b: (b, 0, 0)),          # mask (k)
            c3((nH, H, d)),     # Wq per head (resident, bf16)
            c3((nH, 1, d)),     # bq per head
            c3((nH, L, d)),     # reversed positional-key band (bf16)
            c3((nH, L, d)),     # positional-query band (bf16)
            c2((H, H)),         # Wo (bf16)
            c2((1, H)),         # bo
            c2((1, H)), c2((1, H)),   # LN1 gamma / beta
            c2((H, I)), c2((1, I)),   # Wi (bf16), bi
            c2((I, H)), c2((1, H)),   # Wo2 (bf16), bo2
            c2((1, H)), c2((1, H)),   # LN2 gamma / beta
        ],
        out_specs=pl.BlockSpec((1, S, H), lambda b: (b, 0, 0)),
        out_shape=jax.ShapeDtypeStruct((B, S, H), jnp.float32),
        compiler_params=pltpu.CompilerParams(dimension_semantics=("parallel",)),
    )(qs, k_all, v_all, mq, mk,
      blk["wqh"], blk["bqh"], pos_k_rev, pos_q_h,
      blk["wo"], blk["bo"], blk["g1"], blk["b1"],
      blk["wi"], blk["bi"], blk["wo2"], blk["bo2"], blk["g2"], blk["b2"])


# --------------------------- LM head (fused) -----------------------------------

def _lm_head_kernel(x_ref, wt_ref, bt_ref, g_ref, be_ref, emb_ref, bias_ref,
                    o_ref, t_ref, *, eps):
    # Transform computed once per row block (vocab step 0) and cached in VMEM;
    # the (V,E) embedding table is streamed over vocab tiles.
    @pl.when(pl.program_id(1) == 0)
    def _():
        h = (jnp.dot(x_ref[...].astype(wt_ref.dtype), wt_ref[...],
                     preferred_element_type=jnp.float32) + bt_ref[...])
        h = _gelu(h)
        t_ref[...] = _layer_norm(h, g_ref[...], be_ref[...], eps).astype(
            t_ref.dtype)
    o_ref[...] = (jax.lax.dot_general(
        t_ref[...], emb_ref[...], (((1,), (1,)), ((), ())),
        preferred_element_type=jnp.float32) + bias_ref[...])


def lm_head(x, wt, bt, g, beta, emb, bias, eps):
    """x:(M,H) f32, wt:(H,E) bf16, emb:(V,E) bf16 -> (M,V) f32 logits."""
    M, H = x.shape
    E = wt.shape[1]
    V = emb.shape[0]
    bm = _row_block(M)
    bv = _col_block(V)
    kern = functools.partial(_lm_head_kernel, eps=eps)
    return pl.pallas_call(
        kern,
        grid=(M // bm, V // bv),
        in_specs=[
            pl.BlockSpec((bm, H), lambda i, j: (i, 0)),
            pl.BlockSpec((H, E), lambda i, j: (0, 0)),
            pl.BlockSpec((1, E), lambda i, j: (0, 0)),
            pl.BlockSpec((1, E), lambda i, j: (0, 0)),
            pl.BlockSpec((1, E), lambda i, j: (0, 0)),
            pl.BlockSpec((bv, E), lambda i, j: (j, 0)),   # vocab-streamed table
            pl.BlockSpec((1, bv), lambda i, j: (0, j)),
        ],
        out_specs=pl.BlockSpec((bm, bv), lambda i, j: (i, j)),
        out_shape=jax.ShapeDtypeStruct((M, V), jnp.float32),
        scratch_shapes=[pltpu.VMEM((bm, E), _BF16)],
        compiler_params=pltpu.CompilerParams(
            dimension_semantics=("parallel", "arbitrary")),
    )(x, wt, bt.reshape(1, E), g.reshape(1, E), beta.reshape(1, E), emb,
      bias.reshape(1, V))


# --------------------------- module forward ------------------------------------

def _prep_layer(lyr, H, nH, d, I):
    return dict(
        wqh=lyr["Wq"].reshape(H, nH, d).transpose(1, 0, 2).astype(_BF16),
        bqh=lyr["bq"].reshape(nH, 1, d),
        wo=lyr["Wo"].astype(_BF16),
        bo=lyr["bo"].reshape(1, H),
        g1=lyr["ln1_g"].reshape(1, H), b1=lyr["ln1_b"].reshape(1, H),
        wi=lyr["Wi"].astype(_BF16), bi=lyr["bi"].reshape(1, I),
        wo2=lyr["Wo2"].astype(_BF16), bo2=lyr["bo2"].reshape(1, H),
        g2=lyr["ln2_g"].reshape(1, H), b2=lyr["ln2_b"].reshape(1, H),
    )


def deberta_v3_emd_forward(params, encoder_layers, attention_mask, cfg):
    hidden_states = encoder_layers[-2]
    B, S, H = hidden_states.shape
    nH = cfg["num_attention_heads"]
    d = H // nH
    span = cfg["max_relative_positions"]   # pos_ebd_size (position_buckets<=0)
    eps = cfg["layer_norm_eps"]
    lyr = params["layer"]
    head = params["lm_head"]
    I = lyr["Wi"].shape[1]

    wq = lyr["Wq"].astype(_BF16)
    wk = lyr["Wk"].astype(_BF16)
    wv = lyr["Wv"].astype(_BF16)
    wt = head["Wt"].astype(_BF16)
    emb = params["word_embeddings"].astype(_BF16)            # (V, E)

    # query_states = hidden_states + position_embeddings(arange(S))
    query_states = hidden_states + params["position_embeddings"][:S][None, :, :]

    # (B, S) padding mask; the (q x k) outer product is built inside the kernel.
    mask_f = attention_mask.astype(jnp.float32)
    mask_q = mask_f.reshape(B, S, 1)
    mask_k = mask_f.reshape(B, 1, S)

    # K/V come from hidden_states through the single shared last encoder layer,
    # identical for both decoder iterations -> project once (fused K+V kernel),
    # heads split on the host (free XLA reshape/transpose).
    hs2 = hidden_states.reshape(B * S, H)
    k_flat, v_flat = dual_dense(hs2, wk, lyr["bk"], wv, lyr["bv"])
    k_all = k_flat.reshape(B, S, nH, d).transpose(0, 2, 1, 3)  # (B,nH,S,d) bf16
    v_all = v_flat.reshape(B, S, nH, d).transpose(0, 2, 1, 3)

    # Relative-position band: only the 2S-1 actually-used rel-embedding rows
    # (plus one padding row so the band length is 2S) are gathered (clamped)
    # and projected once with the shared K/Q projections (share_att_key=True).
    L = 2 * S
    band_idx = jnp.clip(jnp.arange(L) - (S - 1) + span, 0, 2 * span - 1)
    rel_band = params["rel_embeddings"][band_idx]             # (2S, H)
    pos_k_band, pos_q_band = dual_dense(rel_band, wk, lyr["bk"], wq, lyr["bq"])
    pos_k_rev = pos_k_band[::-1].reshape(L, nH, d).transpose(1, 0, 2)
    pos_q_h = pos_q_band.reshape(L, nH, d).transpose(1, 0, 2)

    blk = _prep_layer(lyr, H, nH, d, I)
    use_roll = _skew_roll_supported(S)
    scale = math.sqrt(d * 3.0)   # scale_factor = 1 (content) + c2p + p2c

    qs = query_states
    for _ in range(2):           # decoder_layers = [encoder.layer[-1]] * 2
        qs = decoder_layer(qs, k_all, v_all, mask_q, mask_k, pos_k_rev,
                           pos_q_h, blk, scale, eps, use_roll)

    x = qs.reshape(B * S, H)
    logits = lm_head(x, wt, head["bt"], head["ln_g"], head["ln_b"], emb,
                     head["bias"], eps)
    V = emb.shape[0]
    return logits.reshape(B, S, V)


# --------------------------- params / main --------------------------------------

CONFIG = dict(
    hidden_size=32,
    num_attention_heads=2,
    intermediate_size=64,
    vocab_size=64,
    max_position_embeddings=16,
    max_relative_positions=16,
    layer_norm_eps=1e-7,
)


def init_params(key, cfg):
    H = cfg["hidden_size"]
    I = cfg["intermediate_size"]
    V = cfg["vocab_size"]
    P = cfg["max_position_embeddings"]
    span = cfg["max_relative_positions"]
    E = H  # embedding_size defaults to hidden_size
    ks = jax.random.split(key, 12)
    nrm = lambda k, s: 0.02 * jax.random.normal(k, s, jnp.float32)
    zeros = lambda s: jnp.zeros(s, jnp.float32)
    ones = lambda s: jnp.ones(s, jnp.float32)
    return {
        "position_embeddings": nrm(ks[0], (P, E)),
        "rel_embeddings": nrm(ks[1], (2 * span, H)),
        "word_embeddings": nrm(ks[2], (V, E)),
        "layer": {
            "Wq": nrm(ks[3], (H, H)), "bq": zeros((H,)),
            "Wk": nrm(ks[4], (H, H)), "bk": zeros((H,)),
            "Wv": nrm(ks[5], (H, H)), "bv": zeros((H,)),
            "Wo": nrm(ks[6], (H, H)), "bo": zeros((H,)),
            "ln1_g": ones((H,)), "ln1_b": zeros((H,)),
            "Wi": nrm(ks[7], (H, I)), "bi": zeros((I,)),
            "Wo2": nrm(ks[8], (I, H)), "bo2": zeros((H,)),
            "ln2_g": ones((H,)), "ln2_b": zeros((H,)),
        },
        "lm_head": {
            "Wt": nrm(ks[9], (H, E)), "bt": zeros((E,)),
            "ln_g": ones((E,)), "ln_b": zeros((E,)),
            "bias": zeros((V,)),
        },
    }


if __name__ == "__main__":
    key = jax.random.PRNGKey(0)
    pkey, x1key, x2key = jax.random.split(key, 3)
    params = init_params(pkey, CONFIG)

    B, S, H = 2, 8, CONFIG["hidden_size"]
    encoder_layers = (
        jax.random.normal(x1key, (B, S, H), jnp.float32),   # layer[-2] (used)
        jax.random.normal(x2key, (B, S, H), jnp.float32),   # layer[-1] (unused)
    )
    attention_mask = jnp.array(
        [[1, 1, 1, 1, 1, 1, 1, 1],
         [1, 1, 1, 1, 1, 1, 0, 0]], dtype=jnp.int32)

    logits = deberta_v3_emd_forward(params, encoder_layers, attention_mask,
                                    CONFIG)
    logits = jax.block_until_ready(logits)
    assert logits.shape == (B, S, CONFIG["vocab_size"])
    assert bool(jnp.all(jnp.isfinite(logits)))
    print("KERNEL_OK")
</pallas_src>

<mosaic_0001>
module attributes {stable_mosaic.version = 11 : i64} {
  func.func @_dual_dense_kernel(%arg0: i32, %arg1: memref<8x32xf32, #tpu.memory_space<vmem>>, %arg2: memref<32x32xbf16, #tpu.memory_space<vmem>>, %arg3: memref<1x32xf32, #tpu.memory_space<vmem>>, %arg4: memref<32x32xbf16, #tpu.memory_space<vmem>>, %arg5: memref<1x32xf32, #tpu.memory_space<vmem>>, %arg6: memref<8x32xbf16, #tpu.memory_space<vmem>>, %arg7: memref<8x32xbf16, #tpu.memory_space<vmem>>) attributes {dimension_semantics = [#tpu.dimension_semantics<parallel>], iteration_bounds = array<i64: 2>, scalar_prefetch = 0 : i64, scratch_operands = 0 : i64, tpu.core_type = #tpu.core_type<tc>, window_params = [{transform_indices = @transform_0, window_bounds = array<i64: 8, 32>}, {pipeline_mode = #tpu.pipeline_mode<synchronous>, transform_indices = @transform_1, window_bounds = array<i64: 32, 32>}, {pipeline_mode = #tpu.pipeline_mode<synchronous>, transform_indices = @transform_2, window_bounds = array<i64: 1, 32>}, {pipeline_mode = #tpu.pipeline_mode<synchronous>, transform_indices = @transform_3, window_bounds = array<i64: 32, 32>}, {pipeline_mode = #tpu.pipeline_mode<synchronous>, transform_indices = @transform_4, window_bounds = array<i64: 1, 32>}, {transform_indices = @transform_5, window_bounds = array<i64: 8, 32>}, {transform_indices = @transform_6, window_bounds = array<i64: 8, 32>}]} {
    %c0 = arith.constant 0 : index
    %c0_0 = arith.constant 0 : index
    %0 = vector.load %arg1[%c0, %c0_0] : memref<8x32xf32, #tpu.memory_space<vmem>>, vector<8x32xf32>
    %1 = arith.truncf %0 : vector<8x32xf32> to vector<8x32xbf16>
    %c0_1 = arith.constant 0 : index
    %c0_2 = arith.constant 0 : index
    %2 = vector.load %arg2[%c0_1, %c0_2] : memref<32x32xbf16, #tpu.memory_space<vmem>>, vector<32x32xbf16>
    %cst = arith.constant dense<0.000000e+00> : vector<8x32xf32>
    %3 = tpu.matmul %1, %2, %cst {dimension_numbers = #tpu.dot_dimension_numbers<[1], [0], [0], [1], [0, 0, 1, 1], [], []>} : vector<8x32xbf16>, vector<32x32xbf16>, vector<8x32xf32> -> vector<8x32xf32>
    %c0_3 = arith.constant 0 : index
    %c0_4 = arith.constant 0 : index
    %4 = vector.load %arg3[%c0_3, %c0_4] : memref<1x32xf32, #tpu.memory_space<vmem>>, vector<1x32xf32>
    %5 = vector.broadcast %4 : vector<1x32xf32> to vector<8x32xf32>
    %6 = arith.addf %3, %5 : vector<8x32xf32>
    %7 = arith.truncf %6 : vector<8x32xf32> to vector<8x32xbf16>
    %c0_5 = arith.constant 0 : index
    %c0_6 = arith.constant 0 : index
    %8 = vector.load %arg6[%c0_5, %c0_6] : memref<8x32xbf16, #tpu.memory_space<vmem>>, vector<8x32xbf16>
    tpu.vector_store %arg6[%c0_5, %c0_6], %7 {strides = array<i32>} : memref<8x32xbf16, #tpu.memory_space<vmem>>, vector<8x32xbf16>,
    %c0_7 = arith.constant 0 : index
    %c0_8 = arith.constant 0 : index
    %9 = vector.load %arg4[%c0_7, %c0_8] : memref<32x32xbf16, #tpu.memory_space<vmem>>, vector<32x32xbf16>
    %cst_9 = arith.constant dense<0.000000e+00> : vector<8x32xf32>
    %10 = tpu.matmul %1, %9, %cst_9 {dimension_numbers = #tpu.dot_dimension_numbers<[1], [0], [0], [1], [0, 0, 1, 1], [], []>} : vector<8x32xbf16>, vector<32x32xbf16>, vector<8x32xf32> -> vector<8x32xf32>
    %c0_10 = arith.constant 0 : index
    %c0_11 = arith.constant 0 : index
    %11 = vector.load %arg5[%c0_10, %c0_11] : memref<1x32xf32, #tpu.memory_space<vmem>>, vector<1x32xf32>
    %12 = vector.broadcast %11 : vector<1x32xf32> to vector<8x32xf32>
    %13 = arith.addf %10, %12 : vector<8x32xf32>
    %14 = arith.truncf %13 : vector<8x32xf32> to vector<8x32xbf16>
    %c0_12 = arith.constant 0 : index
    %c0_13 = arith.constant 0 : index
    %15 = vector.load %arg7[%c0_12, %c0_13] : memref<8x32xbf16, #tpu.memory_space<vmem>>, vector<8x32xbf16>
    tpu.vector_store %arg7[%c0_12, %c0_13], %14 {strides = array<i32>} : memref<8x32xbf16, #tpu.memory_space<vmem>>, vector<8x32xbf16>,
    return
  }
  func.func @transform_0(%arg0: i32) -> (i32, i32) {
    %c0_i32 = arith.constant 0 : i32
    %c0_i32_0 = arith.constant 0 : i32
    return %arg0, %c0_i32 : i32, i32
  }
  func.func @transform_1(%arg0: i32) -> (i32, i32) {
    %c0_i32 = arith.constant 0 : i32
    %c0_i32_0 = arith.constant 0 : i32
    %c0_i32_1 = arith.constant 0 : i32
    return %c0_i32, %c0_i32_0 : i32, i32
  }
  func.func @transform_2(%arg0: i32) -> (i32, i32) {
    %c0_i32 = arith.constant 0 : i32
    %c0_i32_0 = arith.constant 0 : i32
    %c0_i32_1 = arith.constant 0 : i32
    return %c0_i32, %c0_i32_0 : i32, i32
  }
  func.func @transform_3(%arg0: i32) -> (i32, i32) {
    %c0_i32 = arith.constant 0 : i32
    %c0_i32_0 = arith.constant 0 : i32
    %c0_i32_1 = arith.constant 0 : i32
    return %c0_i32, %c0_i32_0 : i32, i32
  }
  func.func @transform_4(%arg0: i32) -> (i32, i32) {
    %c0_i32 = arith.constant 0 : i32
    %c0_i32_0 = arith.constant 0 : i32
    %c0_i32_1 = arith.constant 0 : i32
    return %c0_i32, %c0_i32_0 : i32, i32
  }
  func.func @transform_5(%arg0: i32) -> (i32, i32) {
    %c0_i32 = arith.constant 0 : i32
    %c0_i32_0 = arith.constant 0 : i32
    return %arg0, %c0_i32 : i32, i32
  }
  func.func @transform_6(%arg0: i32) -> (i32, i32) {
    %c0_i32 = arith.constant 0 : i32
    %c0_i32_0 = arith.constant 0 : i32
    return %arg0, %c0_i32 : i32, i32
  }
}

</mosaic_0001>

<llo_original>
// kernel: tpu_custom_call.1
$region0: #{tpu_custom_call.1}
  #allocation0 [shape = 'u32[]', space=smem, size = 0x4, offset = 0x4, fixed_abs, tag = 'smem constant byte address 0x4 - core index']
  #allocation1 [shape = 'u32[72,128]{1,0:T(1,128)}', space=vmem, size = 0x9000, scoped, tag = 'internal scratch']
  %s0 = inlined_call_operand.hbm [shape: f32[16,32], index: 0, kind: input, shape index: {}]
  %s1 = inlined_call_operand.hbm [shape: bf16[32,32], index: 1, kind: input, shape index: {}]
  %s2 = inlined_call_operand.vmem [shape: f32[1,32], index: 2, kind: input, shape index: {}]
  %s3 = inlined_call_operand.hbm [shape: bf16[32,32], index: 3, kind: input, shape index: {}]
  %s4 = inlined_call_operand.vmem [shape: f32[1,32], index: 4, kind: input, shape index: {}]
  %s5 = inlined_call_operand.hbm [shape: bf16[16,32], index: 5, kind: output, shape index: {0}]
  %s6 = inlined_call_operand.hbm [shape: bf16[16,32], index: 6, kind: output, shape index: {1}]
  %7 = xla_tuple %s5, %s6
  %s8 = sld [smem:[#allocation0]]
  $region73: #{tpu_custom_call.1} parent=0
    _
  %s10 = ssub.s32 1, %s8
  %s11 = scalar_select 0, %s10, %s8
  $region1: #{tpu_custom_call.1} parent=0
    #allocation2 [shape = 'u8[8192]{0}', space=vmem, size = 0x2000, scoped, tag = 'input window, operand 0']
    #allocation3 [shape = 's32[2]{0}', space=sflag, size = 0x8, scoped, tag = 'scoped memory for tpu_custom_call.1']
    #allocation4 [shape = 's32[2]{0}', space=sflag, size = 0x8, scoped, tag = 'scoped memory for tpu_custom_call.1']
    #allocation5 [shape = 'u8[8192]{0}', space=vmem, size = 0x2000, scoped, tag = 'input window, operand 1, single buffered']
    #allocation6 [shape = 's32[1]{0}', space=sflag, size = 0x4, scoped, tag = 'scoped memory for tpu_custom_call.1']
    #allocation7 [shape = 'u8[8192]{0}', space=vmem, size = 0x2000, scoped, tag = 'input window, operand 3, single buffered']
    #allocation8 [shape = 'u8[4096]{0}', space=vmem, size = 0x1000, scoped, tag = 'output window, operand 0']
    #allocation9 [shape = 'u8[4096]{0}', space=vmem, size = 0x1000, scoped, tag = 'output window, operand 1']
    #allocation10 [shape = 's32[2]{0}', space=sflag, size = 0x8, scoped, tag = 'scoped memory for tpu_custom_call.1']
    %12 = vsyncpa [#allocation3], 0
    %s13 = scalar_lea.sflag [#allocation3], 1
    %14 = vsyncpa %s13, 0
    %15 = vsyncpa [#allocation6], 0
    %16 = vsyncpa [#allocation4], 0
    %s17 = scalar_lea.sflag [#allocation4], 1
    %18 = vsyncpa %s17, 0
    %19 = vsyncpa [#allocation10], 0
    %s20 = scalar_lea.sflag [#allocation10], 1
    %21 = vsyncpa %s20, 0
    loop: start=0, step=1, limit=4
    $region2: #{tpu_custom_call.1} parent=1 // loop_pre_header
      _
    $region3: #{tpu_custom_call.1} parent=1 // loop_header
      %s23 = sphi 0, %s27
      %p24 = scmp.ge.s32.totalorder %s23, 4
      %s33 = sphi 0, %s35
      %s36 = sphi 0, %s33
      %s37 = sphi 0, %s36
      %s53 = sphi 0, %s37
      %s57 = sphi 0, %s57
      %s59 = sphi 0, %s57
      %s60 = sphi 0, %s59
      %s74 = sphi 0, %s60
      %s78 = sphi 0, %s78
      %s80 = sphi 0, %s78
      %s81 = sphi 0, %s80
      %s95 = sphi 0, %s81
      %s99 = sphi 0, %s99
      %s101 = sphi 0, %s99
      %s102 = sphi 0, %s101
      %s116 = sphi 0, %s102
      %s120 = sphi 0, %s120
      %s122 = sphi 0, %s120
      %s123 = sphi 0, %s122
      %s137 = sphi 0, %s123
      %s143 = sphi 0, %s145
      %s146 = sphi 0, %s143
      %s147 = sphi 0, %s146
      %s163 = sphi 0, %s147
      %s169 = sphi 0, %s171
      %s172 = sphi 0, %s169
      %s173 = sphi 0, %s172
      %s189 = sphi 0, %s173
    $region4: #{tpu_custom_call.1} parent=1 // loop_header_branch
      %26 = sbr.rel (%p24) target = $region8
    $region5: #{tpu_custom_call.1} parent=1 // loop_body
      %s28 = ssub.s32 %s23, 1
      %s29 = ssub.s32 %s23, 2
      %s30 = sadd.s32 %s23, 1
      %s31 = ssub.s32 %s23, %s30
      %p32 = scmp.eq.s32.totalorder %s31, 0
      %s34 = sadd.s32 %s33, 1
      %s35 = scalar_select %p32, %s33, %s34
      %p38 = pneg %p32
      %p39 = scmp.eq.s32.totalorder %s23, 1
      %p40 = por %p38, %p39
      %p41 = scmp.ne.s32.totalorder %s33, %s36
      %p42 = scmp.eq.s32.totalorder %s23, 0
      %p43 = por %p41, %p42
      %p44 = scmp.ne.s32.totalorder %s33, %s36
      %p45 = scmp.eq.s32.totalorder %s28, 1
      %p46 = por %p44, %p45
      %p47 = scmp.ne.s32.totalorder %s36, %s37
      %p48 = scmp.eq.s32.totalorder %s28, 0
      %p49 = por %p47, %p48
      %p50 = scmp.ne.s32.totalorder %s36, %s37
      %p51 = scmp.eq.s32.totalorder %s29, 1
      %p52 = por %p50, %p51
      %p54 = scmp.ne.s32.totalorder %s37, %s53
      %p55 = scmp.eq.s32.totalorder %s29, 0
      %p56 = por %p54, %p55
      %s58 = sadd.s32 %s57, 1
      %p61 = scmp.eq.s32.totalorder %s23, 1
      %p62 = scmp.ne.s32.totalorder %s57, %s59
      %p63 = scmp.eq.s32.totalorder %s23, 0
      %p64 = por %p62, %p63
      %p65 = scmp.ne.s32.totalorder %s57, %s59
      %p66 = scmp.eq.s32.totalorder %s28, 1
      %p67 = por %p65, %p66
      %p68 = scmp.ne.s32.totalorder %s59, %s60
      %p69 = scmp.eq.s32.totalorder %s28, 0
      %p70 = por %p68, %p69
      %p71 = scmp.ne.s32.totalorder %s59, %s60
      %p72 = scmp.eq.s32.totalorder %s29, 1
      %p73 = por %p71, %p72
      %p75 = scmp.ne.s32.totalorder %s60, %s74
      %p76 = scmp.eq.s32.totalorder %s29, 0
      %p77 = por %p75, %p76
      %s79 = sadd.s32 %s78, 1
      %p82 = scmp.eq.s32.totalorder %s23, 1
      %p83 = scmp.ne.s32.totalorder %s78, %s80
      %p84 = scmp.eq.s32.totalorder %s23, 0
      %p85 = por %p83, %p84
      %p86 = scmp.ne.s32.totalorder %s78, %s80
      %p87 = scmp.eq.s32.totalorder %s28, 1
      %p88 = por %p86, %p87
      %p89 = scmp.ne.s32.totalorder %s80, %s81
      %p90 = scmp.eq.s32.totalorder %s28, 0
      %p91 = por %p89, %p90
      %p92 = scmp.ne.s32.totalorder %s80, %s81
      %p93 = scmp.eq.s32.totalorder %s29, 1
      %p94 = por %p92, %p93
      %p96 = scmp.ne.s32.totalorder %s81, %s95
      %p97 = scmp.eq.s32.totalorder %s29, 0
      %p98 = por %p96, %p97
      %s100 = sadd.s32 %s99, 1
      %p103 = scmp.eq.s32.totalorder %s23, 1
      %p104 = scmp.ne.s32.totalorder %s99, %s101
      %p105 = scmp.eq.s32.totalorder %s23, 0
      %p106 = por %p104, %p105
      %p107 = scmp.ne.s32.totalorder %s99, %s101
      %p108 = scmp.eq.s32.totalorder %s28, 1
      %p109 = por %p107, %p108
      %p110 = scmp.ne.s32.totalorder %s101, %s102
      %p111 = scmp.eq.s32.totalorder %s28, 0
      %p112 = por %p110, %p111
      %p113 = scmp.ne.s32.totalorder %s101, %s102
      %p114 = scmp.eq.s32.totalorder %s29, 1
      %p115 = por %p113, %p114
      %p117 = scmp.ne.s32.totalorder %s102, %s116
      %p118 = scmp.eq.s32.totalorder %s29, 0
      %p119 = por %p117, %p118
      %s121 = sadd.s32 %s120, 1
      %p124 = scmp.eq.s32.totalorder %s23, 1
      %p125 = scmp.ne.s32.totalorder %s120, %s122
      %p126 = scmp.eq.s32.totalorder %s23, 0
      %p127 = por %p125, %p126
      %p128 = scmp.ne.s32.totalorder %s120, %s122
      %p129 = scmp.eq.s32.totalorder %s28, 1
      %p130 = por %p128, %p129
      %p131 = scmp.ne.s32.totalorder %s122, %s123
      %p132 = scmp.eq.s32.totalorder %s28, 0
      %p133 = por %p131, %p132
      %p134 = scmp.ne.s32.totalorder %s122, %s123
      %p135 = scmp.eq.s32.totalorder %s29, 1
      %p136 = por %p134, %p135
      %p138 = scmp.ne.s32.totalorder %s123, %s137
      %p139 = scmp.eq.s32.totalorder %s29, 0
      %p140 = por %p138, %p139
      %s141 = ssub.s32 %s23, %s30
      %p142 = scmp.eq.s32.totalorder %s141, 0
      %s144 = sadd.s32 %s143, 1
      %s145 = scalar_select %p142, %s143, %s144
      %p148 = pneg %p142
      %p149 = scmp.eq.s32.totalorder %s23, 1
      %p150 = por %p148, %p149
      %p151 = scmp.ne.s32.totalorder %s143, %s146
      %p152 = scmp.eq.s32.totalorder %s23, 0
      %p153 = por %p151, %p152
      %p154 = scmp.ne.s32.totalorder %s143, %s146
      %p155 = scmp.eq.s32.totalorder %s28, 1
      %p156 = por %p154, %p155
      %p157 = scmp.ne.s32.totalorder %s146, %s147
      %p158 = scmp.eq.s32.totalorder %s28, 0
      %p159 = por %p157, %p158
      %p160 = scmp.ne.s32.totalorder %s146, %s147
      %p161 = scmp.eq.s32.totalorder %s29, 1
      %p162 = por %p160, %p161
      %p164 = scmp.ne.s32.totalorder %s147, %s163
      %p165 = scmp.eq.s32.totalorder %s29, 0
      %p166 = por %p164, %p165
      %s167 = ssub.s32 %s23, %s30
      %p168 = scmp.eq.s32.totalorder %s167, 0
      %s170 = sadd.s32 %s169, 1
      %s171 = scalar_select %p168, %s169, %s170
      %p174 = pneg %p168
      %p175 = scmp.eq.s32.totalorder %s23, 1
      %p176 = por %p174, %p175
      %p177 = scmp.ne.s32.totalorder %s169, %s172
      %p178 = scmp.eq.s32.totalorder %s23, 0
      %p179 = por %p177, %p178
      %p180 = scmp.ne.s32.totalorder %s169, %s172
      %p181 = scmp.eq.s32.totalorder %s28, 1
      %p182 = por %p180, %p181
      %p183 = scmp.ne.s32.totalorder %s172, %s173
      %p184 = scmp.eq.s32.totalorder %s28, 0
      %p185 = por %p183, %p184
      %p186 = scmp.ne.s32.totalorder %s172, %s173
      %p187 = scmp.eq.s32.totalorder %s29, 1
      %p188 = por %p186, %p187
      %p190 = scmp.ne.s32.totalorder %s173, %s189
      %p191 = scmp.eq.s32.totalorder %s29, 0
      %p192 = por %p190, %p191
      %p193 = scmp.le.s32.totalorder 1, %s23
      %p194 = scmp.lt.s32.totalorder %s23, 3
      %p195 = pnand %p193, %p194
      %p196 = pneg %p195
      // Predicated region
      $region9: #{tpu_custom_call.1} parent=5 // pred_check
        _
      $region10: #{tpu_custom_call.1} parent=5 // pred_check_branch
        %198 = sbr.rel (%p195) target = $region12
      $region11: #{tpu_custom_call.1} parent=5 // pred_region
        %s199 = ssub.s32 %s23, 1
        // Predicated region
        $region13: #{tpu_custom_call.1} parent=11 // pred_check
          %p200 = pneg %p70
        $region14: #{tpu_custom_call.1} parent=11 // pred_check_branch
          %202 = sbr.rel (%p200) target = $region16
        $region15: #{tpu_custom_call.1} parent=11 // pred_region
          %204 = vsyncadd [#allocation6], 0
          %s205 = sshll.u32 %s1, 4
          %s206 = int_to_ptr.hbm [resolvable:$true] %s205
          %s207 = sshll.u32 [#allocation5], 4
          %s208 = int_to_ptr.vmem [resolvable:$true] %s207
          %213 = dma.hbm_to_vmem [thread:$0]  %s206, 256, %s208, [#allocation6], 64, 64, 4
        $region16: #{tpu_custom_call.1} parent=11 // pred_fallthru
          _
        // Predicated region
        $region17: #{tpu_custom_call.1} parent=11 // pred_check
          %p214 = pneg %p91
        $region18: #{tpu_custom_call.1} parent=11 // pred_check_branch
          %216 = sbr.rel (%p214) target = $region20
        $region19: #{tpu_custom_call.1} parent=11 // pred_region
          _
        $region20: #{tpu_custom_call.1} parent=11 // pred_fallthru
          _
        // Predicated region
        $region21: #{tpu_custom_call.1} parent=11 // pred_check
          %p217 = pneg %p112
        $region22: #{tpu_custom_call.1} parent=11 // pred_check_branch
          %219 = sbr.rel (%p217) target = $region24
        $region23: #{tpu_custom_call.1} parent=11 // pred_region
          %221 = vsyncadd [#allocation6], 0
          %s222 = sshll.u32 %s3, 4
          %s223 = int_to_ptr.hbm [resolvable:$true] %s222
          %s224 = sshll.u32 [#allocation7], 4
          %s225 = int_to_ptr.vmem [resolvable:$true] %s224
          %230 = dma.hbm_to_vmem [thread:$0]  %s223, 256, %s225, [#allocation6], 64, 64, 4
        $region24: #{tpu_custom_call.1} parent=11 // pred_fallthru
          _
        // Predicated region
        $region25: #{tpu_custom_call.1} parent=11 // pred_check
          %p231 = pneg %p133
        $region26: #{tpu_custom_call.1} parent=11 // pred_check_branch
          %233 = sbr.rel (%p231) target = $region28
        $region27: #{tpu_custom_call.1} parent=11 // pred_region
          _
        $region28: #{tpu_custom_call.1} parent=11 // pred_fallthru
          _
      $region12: #{tpu_custom_call.1} parent=5 // pred_fallthru
        _
      %p234 = scmp.lt.s32.totalorder %s23, 2
      // Predicated region
      $region29: #{tpu_custom_call.1} parent=5 // pred_check
        %p235 = pneg %p234
      $region30: #{tpu_custom_call.1} parent=5 // pred_check_branch
        %237 = sbr.rel (%p235) target = $region32
      $region31: #{tpu_custom_call.1} parent=5 // pred_region
        // Predicated region
        $region33: #{tpu_custom_call.1} parent=31 // pred_check
          %p238 = pneg %p43
        $region34: #{tpu_custom_call.1} parent=31 // pred_check_branch
          %240 = sbr.rel (%p238) target = $region36
        $region35: #{tpu_custom_call.1} parent=31 // pred_region
          %s241 = sand.u32 %s33, 1
          %s242 = scalar_lea.sflag [#allocation3], %s241
          %s243 = sand.u32 %s33, 1
          %s244 = smul.addr %s243, 8
          %s245 = scalar_lea.vmem [#allocation2], %s244
          %247 = vsyncadd %s242, 0
          %s248 = smul.addr %s23, 8
          %s249 = scalar_lea.hbm %s0, %s248
          %s251 = sshll.u32 %s249, 4
          %s252 = int_to_ptr.hbm [resolvable:$true] %s251
          %s253 = sshll.u32 %s245, 4
          %s254 = int_to_ptr.vmem [resolvable:$true] %s253
          %256 = dma.hbm_to_vmem [thread:$0]  %s252, 128, %s254, %s242
        $region36: #{tpu_custom_call.1} parent=31 // pred_fallthru
          _
      $region32: #{tpu_custom_call.1} parent=5 // pred_fallthru
        _
      %p257 = scmp.le.s32.totalorder 1, %s23
      %p258 = scmp.lt.s32.totalorder %s23, 3
      %p259 = pnand %p257, %p258
      %p260 = pneg %p259
      // Predicated region
      $region37: #{tpu_custom_call.1} parent=5 // pred_check
        _
      $region38: #{tpu_custom_call.1} parent=5 // pred_check_branch
        %262 = sbr.rel (%p259) target = $region40
      $region39: #{tpu_custom_call.1} parent=5 // pred_region
        %s263 = ssub.s32 %s23, 1
        %s264 = sand.u32 %s36, 1
        %s265 = scalar_lea.sflag [#allocation3], %s264
        %s266 = sand.u32 %s36, 1
        %s267 = smul.addr %s266, 8
        %s268 = scalar_lea.vmem [#allocation2], %s267
        // Predicated region
        $region41: #{tpu_custom_call.1} parent=39 // pred_check
          %p269 = pneg %p49
        $region42: #{tpu_custom_call.1} parent=39 // pred_check_branch
          %271 = sbr.rel (%p269) target = $region44
        $region43: #{tpu_custom_call.1} parent=39 // pred_region
          %273 = dma.done %s265, 128
        $region44: #{tpu_custom_call.1} parent=39 // pred_fallthru
          _
        // Predicated region
        $region45: #{tpu_custom_call.1} parent=39 // pred_check
          %p274 = pneg %p70
        $region46: #{tpu_custom_call.1} parent=39 // pred_check_branch
          %276 = sbr.rel (%p274) target = $region48
        $region47: #{tpu_custom_call.1} parent=39 // pred_region
          %278 = dma.done [#allocation6], 256
        $region48: #{tpu_custom_call.1} parent=39 // pred_fallthru
          _
        // Predicated region
        $region49: #{tpu_custom_call.1} parent=39 // pred_check
          %p279 = pneg %p112
        $region50: #{tpu_custom_call.1} parent=39 // pred_check_branch
          %281 = sbr.rel (%p279) target = $region52
        $region51: #{tpu_custom_call.1} parent=39 // pred_region
          %283 = dma.done [#allocation6], 256
        $region52: #{tpu_custom_call.1} parent=39 // pred_fallthru
          _
        %s284 = sand.u32 %s36, 1
        %s285 = scalar_lea.sflag [#allocation3], %s284
        %s286 = sand.u32 %s36, 1
        %s287 = smul.addr %s286, 8
        %s288 = scalar_lea.vmem [#allocation2], %s287
        %p289 = pneg %p49
        %p290 = pneg %p46
        %p291 = pneg %p70
        %p292 = pneg %p67
        %p293 = pneg %p91
        %p294 = pneg %p88
        %p295 = pneg %p112
        %p296 = pneg %p109
        %p297 = pneg %p133
        %p298 = pneg %p130
        %p299 = pneg %p159
        %p300 = pneg %p156
        %s301 = sand.u32 %s146, 1
        %s302 = scalar_lea.sflag [#allocation4], %s301
        %s303 = sand.u32 %s146, 1
        %s304 = smul.addr %s303, 4
        %s305 = scalar_lea.vmem [#allocation8], %s304
        %p306 = pneg %p185
        %p307 = pneg %p182
        %s308 = sand.u32 %s172, 1
        %s309 = scalar_lea.sflag [#allocation10], %s308
        %s310 = sand.u32 %s172, 1
        %s311 = smul.addr %s310, 4
        %s312 = scalar_lea.vmem [#allocation9], %s311
        %v314 = vld [vmem:[%s268] sm:$0xff]
        %v315 = vpack.c.bf16 %v314, %v314
        %v316 = vld [vmem:[#allocation5] sm:$0xf]
        %v317 = vld [vmem:[#allocation5 + $0x4] sm:$0xf]
        %v318 = vld [vmem:[#allocation5 + $0x8] sm:$0xf]
        %v319 = vld [vmem:[#allocation5 + $0xc] sm:$0xf]
        %v320 = vld [vmem:[%s2] sm:$0x1]
        %v322 = vperm.slane %v320, 0
        %v328 = vunpack.c.l.b16 %v316
        %v329 = vunpack.c.l.b16 %v317
        %v330 = vunpack.c.l.b16 %v318
        %v331 = vunpack.c.l.b16 %v319
        %v332 = vpack.c.b16 %v329, %v328
        %v333 = vpack.c.b16 %v331, %v330
        %vm336 = vcmask 261120
        %v338 = vsel %vm336, %v315, 0
        %340 = vmatpush.bf16.msra.mxu0 0
        %341 = vmatpush.bf16.msra.mxu0 0
        %342 = vmatpush.bf16.msra.mxu0 0
        %343 = vmatpush.bf16.msra.mxu0 0
        %344 = vmatpush.bf16.msra.mxu0 0
        %345 = vmatpush.bf16.msra.mxu0 0
        %346 = vmatpush.bf16.msra.mxu0 %v333
        %347 = vmatpush.bf16.msra.mxu0 %v332
        %348 = vmatmul.bf16.gmra.mxu0 %v338
        %v349 = vpop.f32.mrf.mxu0
        %v350 = vadd.f32 %v322, %v349
        %v351 = vpop.f32.mrf.mxu0
        %352 = vdwg.mxu0
        %v353 = vpack.c.bf16 %v350, %v350
        %vm354 = vcmask 257024
        %355 = vst.msk [vmem:[%s305] sm:$0xf] %vm354, %v353
        %v356 = vld [vmem:[#allocation7] sm:$0xf]
        %v357 = vld [vmem:[#allocation7 + $0x4] sm:$0xf]
        %v358 = vld [vmem:[#allocation7 + $0x8] sm:$0xf]
        %v359 = vld [vmem:[#allocation7 + $0xc] sm:$0xf]
        %v360 = vld [vmem:[%s4] sm:$0x1]
        %v362 = vperm.slane %v360, 0
        %v368 = vunpack.c.l.b16 %v356
        %v369 = vunpack.c.l.b16 %v357
        %v370 = vunpack.c.l.b16 %v358
        %v371 = vunpack.c.l.b16 %v359
        %v372 = vpack.c.b16 %v369, %v368
        %v373 = vpack.c.b16 %v371, %v370
        %376 = vmatpush.bf16.msra.mxu0 0
        %377 = vmatpush.bf16.msra.mxu0 0
        %378 = vmatpush.bf16.msra.mxu0 0
        %379 = vmatpush.bf16.msra.mxu0 0
        %380 = vmatpush.bf16.msra.mxu0 0
        %381 = vmatpush.bf16.msra.mxu0 0
        %382 = vmatpush.bf16.msra.mxu0 %v373
        %383 = vmatpush.bf16.msra.mxu0 %v372
        %384 = vmatmul.bf16.gmra.mxu0 %v338
        %v385 = vpop.f32.mrf.mxu0
        %v386 = vadd.f32 %v362, %v385
        %v387 = vpop.f32.mrf.mxu0
        %388 = vdwg.mxu0
        %v389 = vpack.c.bf16 %v386, %v386
        %390 = vst.msk [vmem:[%s312] sm:$0xf] %vm354, %v389
        %s391 = sand.u32 %s146, 1
        %s392 = scalar_lea.sflag [#allocation4], %s391
        %s393 = sand.u32 %s146, 1
        %s394 = smul.addr %s393, 4
        %s395 = scalar_lea.vmem [#allocation8], %s394
        %s396 = sand.u32 %s172, 1
        %s397 = scalar_lea.sflag [#allocation10], %s396
        %s398 = sand.u32 %s172, 1
        %s399 = smul.addr %s398, 4
        %s400 = scalar_lea.vmem [#allocation9], %s399
        // Predicated region
        $region53: #{tpu_custom_call.1} parent=39 // pred_check
          %p401 = pneg %p156
        $region54: #{tpu_custom_call.1} parent=39 // pred_check_branch
          %403 = sbr.rel (%p401) target = $region56
        $region55: #{tpu_custom_call.1} parent=39 // pred_region
          %405 = vsyncadd %s392, 0
          %s406 = smul.addr %s28, 4
          %s407 = scalar_lea.hbm %s5, %s406
          %s409 = sshll.u32 %s395, 4
          %s410 = int_to_ptr.vmem [resolvable:$true] %s409
          %s411 = sshll.u32 %s407, 4
          %s412 = int_to_ptr.hbm [resolvable:$true] %s411
          %414 = dma.vmem_to_hbm [thread:$0]  %s410, 64, %s412, %s392
        $region56: #{tpu_custom_call.1} parent=39 // pred_fallthru
          _
        // Predicated region
        $region57: #{tpu_custom_call.1} parent=39 // pred_check
          %p415 = pneg %p182
        $region58: #{tpu_custom_call.1} parent=39 // pred_check_branch
          %417 = sbr.rel (%p415) target = $region60
        $region59: #{tpu_custom_call.1} parent=39 // pred_region
          %419 = vsyncadd %s397, 0
          %s420 = smul.addr %s28, 4
          %s421 = scalar_lea.hbm %s6, %s420
          %s423 = sshll.u32 %s400, 4
          %s424 = int_to_ptr.vmem [resolvable:$true] %s423
          %s425 = sshll.u32 %s421, 4
          %s426 = int_to_ptr.hbm [resolvable:$true] %s425
          %428 = dma.vmem_to_hbm [thread:$0]  %s424, 64, %s426, %s397
        $region60: #{tpu_custom_call.1} parent=39 // pred_fallthru
          _
      $region40: #{tpu_custom_call.1} parent=5 // pred_fallthru
        _
      %p429 = scmp.le.s32.totalorder 2, %s23
      // Predicated region
      $region61: #{tpu_custom_call.1} parent=5 // pred_check
        %p430 = pneg %p429
      $region62: #{tpu_custom_call.1} parent=5 // pred_check_branch
        %432 = sbr.rel (%p430) target = $region64
      $region63: #{tpu_custom_call.1} parent=5 // pred_region
        %s433 = ssub.s32 %s23, 2
        // Predicated region
        $region65: #{tpu_custom_call.1} parent=63 // pred_check
          %p434 = pneg %p162
        $region66: #{tpu_custom_call.1} parent=63 // pred_check_branch
          %436 = sbr.rel (%p434) target = $region68
        $region67: #{tpu_custom_call.1} parent=63 // pred_region
          %s437 = sand.u32 %s147, 1
          %s438 = scalar_lea.sflag [#allocation4], %s437
          %s439 = sand.u32 %s147, 1
          %s440 = smul.addr %s439, 4
          %s441 = scalar_lea.vmem [#allocation8], %s440
          %443 = dma.done %s438, 64
        $region68: #{tpu_custom_call.1} parent=63 // pred_fallthru
          _
        // Predicated region
        $region69: #{tpu_custom_call.1} parent=63 // pred_check
          %p444 = pneg %p188
        $region70: #{tpu_custom_call.1} parent=63 // pred_check_branch
          %446 = sbr.rel (%p444) target = $region72
        $region71: #{tpu_custom_call.1} parent=63 // pred_region
          %s447 = sand.u32 %s173, 1
          %s448 = scalar_lea.sflag [#allocation10], %s447
          %s449 = sand.u32 %s173, 1
          %s450 = smul.addr %s449, 4
          %s451 = scalar_lea.vmem [#allocation9], %s450
          %453 = dma.done %s448, 64
        $region72: #{tpu_custom_call.1} parent=63 // pred_fallthru
          _
      $region64: #{tpu_custom_call.1} parent=5 // pred_fallthru
        _
    $region6: #{tpu_custom_call.1} parent=1 // loop_footer
      %s27 = sadd.s32 1, %s23
    $region7: #{tpu_custom_call.1} parent=1 // loop_footer_branch
      %22 = sbr.rel target = $region3
    $region8: #{tpu_custom_call.1} parent=1 // loop_exit
      _
    %454 = vsyncpa [#allocation3], 1
    %s455 = scalar_lea.sflag [#allocation3], 1
    %456 = vsyncpa %s455, 1
    %457 = vsyncpa [#allocation6], 1
    %458 = vsyncpa [#allocation4], 1
    %s459 = scalar_lea.sflag [#allocation4], 1
    %460 = vsyncpa %s459, 1
    %461 = vsyncpa [#allocation10], 1
    %s462 = scalar_lea.sflag [#allocation10], 1
    %463 = vsyncpa %s462, 1

</llo_original>
